<compile_context>
chip_gen: v7x
topology: tpu7x:2x2x1
jax: 0.10.0
libtpu: 0.0.40
codegen_flags: <defaults>
</compile_context>

<pallas_src>
import jax
import jax.numpy as jnp
from jax.experimental import pallas as pl
from jax.experimental.pallas import tpu as pltpu


# ------------------------------ tanh-approx GELU ------------------------------

_SQRT_2_OVER_PI = 0.7978845608028654
_GELU_C = 0.044715


def _gelu_tanh(x):
    return 0.5 * x * (1.0 + jnp.tanh(_SQRT_2_OVER_PI * (x + _GELU_C * x * x * x)))


# ------------------------------- fused kernel ---------------------------------

def _pff_kernel(x_ref, w1_ref, b1_ref, w2_ref, b2_ref, g_ref, beta_ref,
                o_ref, acc_ref):
    k = pl.program_id(1)
    nk = pl.num_programs(1)

    @pl.when(k == 0)
    def _():
        acc_ref[...] = jnp.zeros_like(acc_ref)

    x = x_ref[...]                                                # (tm, D) f32

    # fc1 on this hidden block: bf16 MXU operands, f32 accumulation; GELU
    # result emitted directly as bf16 for the second matmul.
    h = jnp.dot(x.astype(jnp.bfloat16), w1_ref[...],
                preferred_element_type=jnp.float32) + b1_ref[...]
    h = _gelu_tanh(h).astype(jnp.bfloat16)                        # (tm, tdh) bf16

    # fc2 partial sum over this hidden block (f32 accumulator in VMEM scratch).
    acc_ref[...] += jnp.dot(h, w2_ref[...], preferred_element_type=jnp.float32)

    @pl.when(k == nk - 1)
    def _():
        # dropout = identity (eval); residual add in f32.
        y = acc_ref[...] + b2_ref[...] + x
        # One-pass LayerNorm statistics over d_model, eps = 1e-9.
        inv_d = 1.0 / y.shape[-1]
        s = jnp.sum(y, axis=-1, keepdims=True)
        s2 = jnp.sum(y * y, axis=-1, keepdims=True)
        mu = s * inv_d
        var = jnp.maximum(s2 * inv_d - mu * mu, 0.0)
        yn = (y - mu) * jax.lax.rsqrt(var + 1e-9)
        o_ref[...] = (yn * g_ref[...] + beta_ref[...]).astype(o_ref.dtype)


# --------------------------------- wrapper ------------------------------------

def _round_up(x, m):
    return ((x + m - 1) // m) * m


def _vmem_capacity_bytes():
    try:
        info = pltpu.get_tpu_info()
    except Exception:
        return None
    for name in ("vmem_capacity_bytes", "vmem_size_bytes", "vmem_bytes"):
        v = getattr(info, name, None)
        if v:
            return int(v)
    return None


def _choose_tm(m, target):
    """Largest row tile <= target that is a multiple of 16 (then 8) and divides m,
    so no wrapper-side pad/slice is needed.  Falls back to padding otherwise."""
    for align in (16, 8):
        t = (min(target, m) // align) * align
        while t >= align:
            if m % t == 0:
                return t, False
            t -= align
    return min(target, _round_up(max(m, 1), 16)), True


def tensor_pff_forward(params, x, *, tm=None, vmem_limit_bytes=None,
                       out_dtype=jnp.float32):
    """x: [B, S, d_model] -> [B, S, d_model] (Tensor_PFF forward, eval mode)."""
    B, S, D = x.shape
    Dh = params["w1"].shape[1]
    M = B * S

    # Generation-aware VMEM budget (v5e/v6e: 128 MiB physical, v7x: 64 MiB).
    if vmem_limit_bytes is None:
        cap = _vmem_capacity_bytes()
        vmem_limit_bytes = int(0.8 * cap) if cap else 64 * 1024 * 1024

    # Row tile: bigger on 128-MiB chips, smaller on v7x; multiple of 16.
    if tm is None:
        tm = 512 if vmem_limit_bytes >= (80 << 20) else 256
    tm, need_pad = _choose_tm(M, tm)
    Mp = _round_up(M, tm) if need_pad else M

    x2 = x.reshape(M, D).astype(jnp.float32)
    if Mp != M:
        # TODO(synk): padding fallback only (ragged M with no suitable divisor).
        x2 = jnp.pad(x2, ((0, Mp - M), (0, 0)))

    # Hidden-dim tile: keep bf16 W1/W2 fully resident when they fit the VMEM
    # budget, otherwise stream blocks along a reduction grid axis.
    budget = int(0.70 * vmem_limit_bytes)

    def footprint(tdh, w_bufs):
        w = 2 * (D * tdh + tdh * D) * w_bufs          # bf16 W1 + W2 blocks
        xio = tm * D * 4 * (2 + 2 + 1)                # x, out (2-deep) + f32 acc
        h = tm * tdh * (4 + 2)                        # f32 pre-act + bf16 GELU slab
        small = (tdh + 3 * D) * 4 * 2                 # biases / gamma / beta
        return w + xio + h + small

    Dh_p = _round_up(Dh, 128)
    tdh = Dh_p
    while tdh > 128 and footprint(tdh, 1 if tdh == Dh_p else 2) > budget:
        tdh = max(128, _round_up(tdh // 2, 128))
    Dh_p = _round_up(Dh, tdh)                         # padding Dh is semantically free
    nk = Dh_p // tdh

    # Parameter prep: bf16 weights (halve HBM->VMEM bytes), f32 vectors.
    w1 = params["w1"].astype(jnp.bfloat16)
    w2 = params["w2"].astype(jnp.bfloat16)
    b1 = params["b1"].reshape(1, Dh).astype(jnp.float32)
    if Dh_p != Dh:
        w1 = jnp.pad(w1, ((0, 0), (0, Dh_p - Dh)))
        w2 = jnp.pad(w2, ((0, Dh_p - Dh), (0, 0)))
        b1 = jnp.pad(b1, ((0, 0), (0, Dh_p - Dh)))
    b2 = params["b2"].reshape(1, D).astype(jnp.float32)
    gamma = params["ln_gamma"].reshape(1, D).astype(jnp.float32)
    beta = params["ln_beta"].reshape(1, D).astype(jnp.float32)

    grid = (Mp // tm, nk)
    w_resident = (nk == 1)  # weights are DMA'd once -> single-buffer them

    def run(use_buffered):
        def spec(shape, index_map, single_buffer):
            if use_buffered and single_buffer:
                return pl.BlockSpec(shape, index_map,
                                    pipeline_mode=pl.Buffered(1))
            return pl.BlockSpec(shape, index_map)

        in_specs = [
            spec((tm, D), lambda i, k: (i, 0), False),        # x rows (tiled over M)
            spec((D, tdh), lambda i, k: (0, k), w_resident),  # W1 column block
            spec((1, tdh), lambda i, k: (0, k), w_resident),  # b1 block
            spec((tdh, D), lambda i, k: (k, 0), w_resident),  # W2 row block
            spec((1, D), lambda i, k: (0, 0), True),          # b2
            spec((1, D), lambda i, k: (0, 0), True),          # LN gamma
            spec((1, D), lambda i, k: (0, 0), True),          # LN beta
        ]
        out_spec = pl.BlockSpec((tm, D), lambda i, k: (i, 0))

        return pl.pallas_call(
            _pff_kernel,
            grid=grid,
            in_specs=in_specs,
            out_specs=out_spec,
            out_shape=jax.ShapeDtypeStruct((Mp, D), out_dtype),
            scratch_shapes=[pltpu.VMEM((tm, D), jnp.float32)],
            compiler_params=pltpu.CompilerParams(
                dimension_semantics=("parallel", "arbitrary"),
                vmem_limit_bytes=int(vmem_limit_bytes),
            ),
        )(x2, w1, b1, w2, b2, gamma, beta)

    try:
        out = run(use_buffered=True)
    except Exception:
        # Fallback for jax versions where BlockSpec pipeline_mode / Buffered(1)
        # is unsupported; identical kernel, default double-buffering.
        out = run(use_buffered=False)

    if Mp != M:
        out = out[:M]
    return out.reshape(B, S, D).astype(out_dtype)


# -------------------------------- references ----------------------------------

def _reference_f32(params, x):
    """Pure-JAX f32 reference of the PyTorch forward (exact erf GELU, eval mode)."""
    h = x @ params["w1"] + params["b1"]
    h = jax.nn.gelu(h, approximate=False)
    y = h @ params["w2"] + params["b2"]
    y = y + x
    mu = jnp.mean(y, axis=-1, keepdims=True)
    var = jnp.mean(jnp.square(y - mu), axis=-1, keepdims=True)
    yn = (y - mu) * jax.lax.rsqrt(var + 1e-9)
    return yn * params["ln_gamma"] + params["ln_beta"]


def _reference_bf16(params, x):
    """Reference matching the kernel's numerics (bf16 matmul operands, tanh GELU)."""
    h = jnp.dot(x.astype(jnp.bfloat16), params["w1"].astype(jnp.bfloat16),
                preferred_element_type=jnp.float32) + params["b1"]
    h = _gelu_tanh(h).astype(jnp.bfloat16)
    y = jnp.dot(h, params["w2"].astype(jnp.bfloat16),
                preferred_element_type=jnp.float32) + params["b2"]
    y = y + x
    mu = jnp.mean(y, axis=-1, keepdims=True)
    var = jnp.mean(jnp.square(y - mu), axis=-1, keepdims=True)
    yn = (y - mu) * jax.lax.rsqrt(var + 1e-9)
    return yn * params["ln_gamma"] + params["ln_beta"]


def init_params(key, d_model, d_hid):
    k1, k2, k3, k4 = jax.random.split(key, 4)
    scale = 0.02
    return {
        "w1": scale * jax.random.normal(k1, (d_model, d_hid), jnp.float32),
        "b1": scale * jax.random.normal(k2, (d_hid,), jnp.float32),
        "w2": scale * jax.random.normal(k3, (d_hid, d_model), jnp.float32),
        "b2": scale * jax.random.normal(k4, (d_model,), jnp.float32),
        "ln_gamma": jnp.ones((d_model,), jnp.float32),   # nn.LayerNorm default init
        "ln_beta": jnp.zeros((d_model,), jnp.float32),
    }


if __name__ == "__main__":
    B, S, d_model, d_hid = 2, 8, 32, 128

    key = jax.random.PRNGKey(0)
    kp, kx = jax.random.split(key)
    params = init_params(kp, d_model, d_hid)
    x = jax.random.normal(kx, (B, S, d_model), jnp.float32)

    out = tensor_pff_forward(params, x)
    jax.block_until_ready(out)

    assert out.shape == (B, S, d_model)
    assert bool(jnp.all(jnp.isfinite(out))), "non-finite output"

    ref_bf16 = _reference_bf16(params, x)
    ref_f32 = _reference_f32(params, x)
    err_bf16 = float(jnp.max(jnp.abs(out - ref_bf16)))
    err_f32 = float(jnp.max(jnp.abs(out - ref_f32)))
    assert err_bf16 < 1e-2, f"mismatch vs bf16/tanh reference: {err_bf16}"
    assert err_f32 < 5e-2, f"mismatch vs f32/erf reference: {err_f32}"

    print("KERNEL_OK")
</pallas_src>

<mosaic_0001>
module attributes {stable_mosaic.version = 11 : i64} {
  func.func @_pff_kernel(%arg0: i32, %arg1: i32, %arg2: memref<16x32xf32, #tpu.memory_space<vmem>>, %arg3: memref<32x128xbf16, #tpu.memory_space<vmem>>, %arg4: memref<1x128xf32, #tpu.memory_space<vmem>>, %arg5: memref<128x32xbf16, #tpu.memory_space<vmem>>, %arg6: memref<1x32xf32, #tpu.memory_space<vmem>>, %arg7: memref<1x32xf32, #tpu.memory_space<vmem>>, %arg8: memref<1x32xf32, #tpu.memory_space<vmem>>, %arg9: memref<16x32xf32, #tpu.memory_space<vmem>>, %arg10: memref<16x32xf32, #tpu.memory_space<vmem>>) attributes {dimension_semantics = [#tpu.dimension_semantics<parallel>, #tpu.dimension_semantics<arbitrary>], iteration_bounds = array<i64: 1, 1>, scalar_prefetch = 0 : i64, scratch_operands = 1 : i64, tpu.core_type = #tpu.core_type<tc>, window_params = [{transform_indices = @transform_0, window_bounds = array<i64: 16, 32>}, {pipeline_mode = #tpu.pipeline_mode<synchronous>, transform_indices = @transform_1, window_bounds = array<i64: 32, 128>}, {pipeline_mode = #tpu.pipeline_mode<synchronous>, transform_indices = @transform_2, window_bounds = array<i64: 1, 128>}, {pipeline_mode = #tpu.pipeline_mode<synchronous>, transform_indices = @transform_3, window_bounds = array<i64: 128, 32>}, {pipeline_mode = #tpu.pipeline_mode<synchronous>, transform_indices = @transform_4, window_bounds = array<i64: 1, 32>}, {pipeline_mode = #tpu.pipeline_mode<synchronous>, transform_indices = @transform_5, window_bounds = array<i64: 1, 32>}, {pipeline_mode = #tpu.pipeline_mode<synchronous>, transform_indices = @transform_6, window_bounds = array<i64: 1, 32>}, {transform_indices = @transform_7, window_bounds = array<i64: 16, 32>}]} {
    %c0_i32 = arith.constant 0 : i32
    %0 = arith.cmpi eq, %arg1, %c0_i32 : i32
    %1 = arith.extui %0 : i1 to i32
    %c0_i32_0 = arith.constant 0 : i32
    %2 = arith.cmpi ne, %1, %c0_i32_0 : i32
    scf.if %2 {
      %cst_19 = arith.constant 0.000000e+00 : f32
      %32 = vector.broadcast %cst_19 : f32 to vector<16x32xf32>
      %c0_20 = arith.constant 0 : index
      %c0_21 = arith.constant 0 : index
      %33 = vector.load %arg10[%c0_20, %c0_21] : memref<16x32xf32, #tpu.memory_space<vmem>>, vector<16x32xf32>
      tpu.vector_store %arg10[%c0_20, %c0_21], %32 {strides = array<i32>} : memref<16x32xf32, #tpu.memory_space<vmem>>, vector<16x32xf32>,
    } else {
    }
    %c0 = arith.constant 0 : index
    %c0_1 = arith.constant 0 : index
    %3 = vector.load %arg2[%c0, %c0_1] : memref<16x32xf32, #tpu.memory_space<vmem>>, vector<16x32xf32>
    %4 = arith.truncf %3 : vector<16x32xf32> to vector<16x32xbf16>
    %c0_2 = arith.constant 0 : index
    %c0_3 = arith.constant 0 : index
    %5 = vector.load %arg3[%c0_2, %c0_3] : memref<32x128xbf16, #tpu.memory_space<vmem>>, vector<32x128xbf16>
    %cst = arith.constant dense<0.000000e+00> : vector<16x128xf32>
    %6 = tpu.matmul %4, %5, %cst {dimension_numbers = #tpu.dot_dimension_numbers<[1], [0], [0], [1], [0, 0, 1, 1], [], []>} : vector<16x32xbf16>, vector<32x128xbf16>, vector<16x128xf32> -> vector<16x128xf32>
    %c0_4 = arith.constant 0 : index
    %c0_5 = arith.constant 0 : index
    %7 = vector.load %arg4[%c0_4, %c0_5] : memref<1x128xf32, #tpu.memory_space<vmem>>, vector<1x128xf32>
    %8 = vector.broadcast %7 : vector<1x128xf32> to vector<16x128xf32>
    %9 = arith.addf %6, %8 : vector<16x128xf32>
    %cst_6 = arith.constant 5.000000e-01 : f32
    %10 = vector.broadcast %cst_6 : f32 to vector<16x128xf32>
    %11 = arith.mulf %10, %9 : vector<16x128xf32>
    %cst_7 = arith.constant 4.471500e-02 : f32
    %12 = vector.broadcast %cst_7 : f32 to vector<16x128xf32>
    %13 = arith.mulf %12, %9 : vector<16x128xf32>
    %14 = arith.mulf %13, %9 : vector<16x128xf32>
    %15 = arith.mulf %14, %9 : vector<16x128xf32>
    %16 = arith.addf %9, %15 : vector<16x128xf32>
    %cst_8 = arith.constant 0.797884583 : f32
    %17 = vector.broadcast %cst_8 : f32 to vector<16x128xf32>
    %18 = arith.mulf %17, %16 : vector<16x128xf32>
    %19 = math.tanh %18 : vector<16x128xf32>
    %cst_9 = arith.constant 1.000000e+00 : f32
    %20 = vector.broadcast %cst_9 : f32 to vector<16x128xf32>
    %21 = arith.addf %20, %19 : vector<16x128xf32>
    %22 = arith.mulf %11, %21 : vector<16x128xf32>
    %23 = arith.truncf %22 : vector<16x128xf32> to vector<16x128xbf16>
    %c0_10 = arith.constant 0 : index
    %c0_11 = arith.constant 0 : index
    %24 = vector.load %arg10[%c0_10, %c0_11] : memref<16x32xf32, #tpu.memory_space<vmem>>, vector<16x32xf32>
    %c0_12 = arith.constant 0 : index
    %c0_13 = arith.constant 0 : index
    %25 = vector.load %arg5[%c0_12, %c0_13] : memref<128x32xbf16, #tpu.memory_space<vmem>>, vector<128x32xbf16>
    %cst_14 = arith.constant dense<0.000000e+00> : vector<16x32xf32>
    %26 = tpu.matmul %23, %25, %cst_14 {dimension_numbers = #tpu.dot_dimension_numbers<[1], [0], [0], [1], [0, 0, 1, 1], [], []>} : vector<16x128xbf16>, vector<128x32xbf16>, vector<16x32xf32> -> vector<16x32xf32>
    %27 = arith.addf %24, %26 : vector<16x32xf32>
    %c0_15 = arith.constant 0 : index
    %c0_16 = arith.constant 0 : index
    %28 = vector.load %arg10[%c0_15, %c0_16] : memref<16x32xf32, #tpu.memory_space<vmem>>, vector<16x32xf32>
    tpu.vector_store %arg10[%c0_15, %c0_16], %27 {strides = array<i32>} : memref<16x32xf32, #tpu.memory_space<vmem>>, vector<16x32xf32>,
    %c0_i32_17 = arith.constant 0 : i32
    %29 = arith.cmpi eq, %arg1, %c0_i32_17 : i32
    %30 = arith.extui %29 : i1 to i32
    %c0_i32_18 = arith.constant 0 : i32
    %31 = arith.cmpi ne, %30, %c0_i32_18 : i32
    scf.if %31 {
      %c0_19 = arith.constant 0 : index
      %c0_20 = arith.constant 0 : index
      %32 = vector.load %arg10[%c0_19, %c0_20] : memref<16x32xf32, #tpu.memory_space<vmem>>, vector<16x32xf32>
      %c0_21 = arith.constant 0 : index
      %c0_22 = arith.constant 0 : index
      %33 = vector.load %arg6[%c0_21, %c0_22] : memref<1x32xf32, #tpu.memory_space<vmem>>, vector<1x32xf32>
      %34 = vector.broadcast %33 : vector<1x32xf32> to vector<16x32xf32>
      %35 = arith.addf %32, %34 : vector<16x32xf32>
      %36 = arith.addf %35, %3 : vector<16x32xf32>
      %cst_23 = arith.constant dense<0.000000e+00> : vector<16xf32>
      %37 = vector.multi_reduction <add>, %36, %cst_23 [1] : vector<16x32xf32> to vector<16xf32>
      %38 = vector.shape_cast %37 : vector<16xf32> to vector<16x1xf32>
      %39 = arith.mulf %36, %36 : vector<16x32xf32>
      %cst_24 = arith.constant dense<0.000000e+00> : vector<16xf32>
      %40 = vector.multi_reduction <add>, %39, %cst_24 [1] : vector<16x32xf32> to vector<16xf32>
      %41 = vector.shape_cast %40 : vector<16xf32> to vector<16x1xf32>
      %cst_25 = arith.constant 3.125000e-02 : f32
      %42 = vector.broadcast %cst_25 : f32 to vector<16x1xf32>
      %43 = arith.mulf %38, %42 : vector<16x1xf32>
      %cst_26 = arith.constant 3.125000e-02 : f32
      %44 = vector.broadcast %cst_26 : f32 to vector<16x1xf32>
      %45 = arith.mulf %41, %44 : vector<16x1xf32>
      %46 = arith.mulf %43, %43 : vector<16x1xf32>
      %47 = arith.subf %45, %46 : vector<16x1xf32>
      %cst_27 = arith.constant 0.000000e+00 : f32
      %48 = vector.broadcast %cst_27 : f32 to vector<16x1xf32>
      %49 = arith.maximumf %47, %48 : vector<16x1xf32>
      %50 = vector.broadcast %43 : vector<16x1xf32> to vector<16x32xf32>
      %51 = arith.subf %36, %50 : vector<16x32xf32>
      %cst_28 = arith.constant 9.99999971E-10 : f32
      %52 = vector.broadcast %cst_28 : f32 to vector<16x1xf32>
      %53 = arith.addf %49, %52 : vector<16x1xf32>
      %54 = math.rsqrt %53 : vector<16x1xf32>
      %55 = vector.broadcast %54 : vector<16x1xf32> to vector<16x32xf32>
      %56 = arith.mulf %51, %55 : vector<16x32xf32>
      %c0_29 = arith.constant 0 : index
      %c0_30 = arith.constant 0 : index
      %57 = vector.load %arg7[%c0_29, %c0_30] : memref<1x32xf32, #tpu.memory_space<vmem>>, vector<1x32xf32>
      %58 = vector.broadcast %57 : vector<1x32xf32> to vector<16x32xf32>
      %59 = arith.mulf %56, %58 : vector<16x32xf32>
      %c0_31 = arith.constant 0 : index
      %c0_32 = arith.constant 0 : index
      %60 = vector.load %arg8[%c0_31, %c0_32] : memref<1x32xf32, #tpu.memory_space<vmem>>, vector<1x32xf32>
      %61 = vector.broadcast %60 : vector<1x32xf32> to vector<16x32xf32>
      %62 = arith.addf %59, %61 : vector<16x32xf32>
      %c0_33 = arith.constant 0 : index
      %c0_34 = arith.constant 0 : index
      %63 = vector.load %arg9[%c0_33, %c0_34] : memref<16x32xf32, #tpu.memory_space<vmem>>, vector<16x32xf32>
      tpu.vector_store %arg9[%c0_33, %c0_34], %62 {strides = array<i32>} : memref<16x32xf32, #tpu.memory_space<vmem>>, vector<16x32xf32>,
    } else {
    }
    return
  }
  func.func @transform_0(%arg0: i32, %arg1: i32) -> (i32, i32) {
    %c0_i32 = arith.constant 0 : i32
    %c0_i32_0 = arith.constant 0 : i32
    return %arg0, %c0_i32 : i32, i32
  }
  func.func @transform_1(%arg0: i32, %arg1: i32) -> (i32, i32) {
    %c0_i32 = arith.constant 0 : i32
    %c0_i32_0 = arith.constant 0 : i32
    return %c0_i32, %arg1 : i32, i32
  }
  func.func @transform_2(%arg0: i32, %arg1: i32) -> (i32, i32) {
    %c0_i32 = arith.constant 0 : i32
    %c0_i32_0 = arith.constant 0 : i32
    return %c0_i32, %arg1 : i32, i32
  }
  func.func @transform_3(%arg0: i32, %arg1: i32) -> (i32, i32) {
    %c0_i32 = arith.constant 0 : i32
    %c0_i32_0 = arith.constant 0 : i32
    return %arg1, %c0_i32 : i32, i32
  }
  func.func @transform_4(%arg0: i32, %arg1: i32) -> (i32, i32) {
    %c0_i32 = arith.constant 0 : i32
    %c0_i32_0 = arith.constant 0 : i32
    %c0_i32_1 = arith.constant 0 : i32
    return %c0_i32, %c0_i32_0 : i32, i32
  }
  func.func @transform_5(%arg0: i32, %arg1: i32) -> (i32, i32) {
    %c0_i32 = arith.constant 0 : i32
    %c0_i32_0 = arith.constant 0 : i32
    %c0_i32_1 = arith.constant 0 : i32
    return %c0_i32, %c0_i32_0 : i32, i32
  }
  func.func @transform_6(%arg0: i32, %arg1: i32) -> (i32, i32) {
    %c0_i32 = arith.constant 0 : i32
    %c0_i32_0 = arith.constant 0 : i32
    %c0_i32_1 = arith.constant 0 : i32
    return %c0_i32, %c0_i32_0 : i32, i32
  }
  func.func @transform_7(%arg0: i32, %arg1: i32) -> (i32, i32) {
    %c0_i32 = arith.constant 0 : i32
    %c0_i32_0 = arith.constant 0 : i32
    return %arg0, %c0_i32 : i32, i32
  }
}

module attributes {stable_mosaic.version = 11 : i64} {
  func.func @_pff_kernel(%arg0: i32, %arg1: i32, %arg2: memref<16x32xf32, #tpu.memory_space<vmem>>, %arg3: memref<32x128xbf16, #tpu.memory_space<vmem>>, %arg4: memref<1x128xf32, #tpu.memory_space<vmem>>, %arg5: memref<128x32xbf16, #tpu.memory_space<vmem>>, %arg6: memref<1x32xf32, #tpu.memory_space<vmem>>, %arg7: memref<1x32xf32, #tpu.memory_space<vmem>>, %arg8: memref<1x32xf32, #tpu.memory_space<vmem>>, %arg9: memref<16x32xf32, #tpu.memory_space<vmem>>, %arg10: memref<16x32xf32, #tpu.memory_space<vmem>>) attributes {dimension_semantics = [#tpu.dimension_semantics<parallel>, #tpu.dimension_semantics<arbitrary>], iteration_bounds = array<i64: 1, 1>, scalar_prefetch = 0 : i64, scratch_operands = 1 : i64, tpu.core_type = #tpu.core_type<tc>, window_params = [{transform_indices = @transform_0, window_bounds = array<i64: 16, 32>}, {transform_indices = @transform_1, window_bounds = array<i64: 32, 128>}, {transform_indices = @transform_2, window_bounds = array<i64: 1, 128>}, {transform_indices = @transform_3, window_bounds = array<i64: 128, 32>}, {pipeline_mode = #tpu.pipeline_mode<synchronous>, transform_indices = @transform_4, window_bounds = array<i64: 1, 32>}, {pipeline_mode = #tpu.pipeline_mode<synchronous>, transform_indices = @transform_5, window_bounds = array<i64: 1, 32>}, {pipeline_mode = #tpu.pipeline_mode<synchronous>, transform_indices = @transform_6, window_bounds = array<i64: 1, 32>}, {transform_indices = @transform_7, window_bounds = array<i64: 16, 32>}]} {
    %c0_i32 = arith.constant 0 : i32
    %0 = arith.cmpi eq, %arg1, %c0_i32 : i32
    %1 = arith.extui %0 : i1 to i32
    %c0_i32_0 = arith.constant 0 : i32
    %2 = arith.cmpi ne, %1, %c0_i32_0 : i32
    scf.if %2 {
      %cst_19 = arith.constant 0.000000e+00 : f32
      %32 = vector.broadcast %cst_19 : f32 to vector<16x32xf32>
      %c0_20 = arith.constant 0 : index
      %c0_21 = arith.constant 0 : index
      %33 = vector.load %arg10[%c0_20, %c0_21] : memref<16x32xf32, #tpu.memory_space<vmem>>, vector<16x32xf32>
      tpu.vector_store %arg10[%c0_20, %c0_21], %32 {strides = array<i32>} : memref<16x32xf32, #tpu.memory_space<vmem>>, vector<16x32xf32>,
    } else {
    }
    %c0 = arith.constant 0 : index
    %c0_1 = arith.constant 0 : index
    %3 = vector.load %arg2[%c0, %c0_1] : memref<16x32xf32, #tpu.memory_space<vmem>>, vector<16x32xf32>
    %4 = arith.truncf %3 : vector<16x32xf32> to vector<16x32xbf16>
    %c0_2 = arith.constant 0 : index
    %c0_3 = arith.constant 0 : index
    %5 = vector.load %arg3[%c0_2, %c0_3] : memref<32x128xbf16, #tpu.memory_space<vmem>>, vector<32x128xbf16>
    %cst = arith.constant dense<0.000000e+00> : vector<16x128xf32>
    %6 = tpu.matmul %4, %5, %cst {dimension_numbers = #tpu.dot_dimension_numbers<[1], [0], [0], [1], [0, 0, 1, 1], [], []>} : vector<16x32xbf16>, vector<32x128xbf16>, vector<16x128xf32> -> vector<16x128xf32>
    %c0_4 = arith.constant 0 : index
    %c0_5 = arith.constant 0 : index
    %7 = vector.load %arg4[%c0_4, %c0_5] : memref<1x128xf32, #tpu.memory_space<vmem>>, vector<1x128xf32>
    %8 = vector.broadcast %7 : vector<1x128xf32> to vector<16x128xf32>
    %9 = arith.addf %6, %8 : vector<16x128xf32>
    %cst_6 = arith.constant 5.000000e-01 : f32
    %10 = vector.broadcast %cst_6 : f32 to vector<16x128xf32>
    %11 = arith.mulf %10, %9 : vector<16x128xf32>
    %cst_7 = arith.constant 4.471500e-02 : f32
    %12 = vector.broadcast %cst_7 : f32 to vector<16x128xf32>
    %13 = arith.mulf %12, %9 : vector<16x128xf32>
    %14 = arith.mulf %13, %9 : vector<16x128xf32>
    %15 = arith.mulf %14, %9 : vector<16x128xf32>
    %16 = arith.addf %9, %15 : vector<16x128xf32>
    %cst_8 = arith.constant 0.797884583 : f32
    %17 = vector.broadcast %cst_8 : f32 to vector<16x128xf32>
    %18 = arith.mulf %17, %16 : vector<16x128xf32>
    %19 = math.tanh %18 : vector<16x128xf32>
    %cst_9 = arith.constant 1.000000e+00 : f32
    %20 = vector.broadcast %cst_9 : f32 to vector<16x128xf32>
    %21 = arith.addf %20, %19 : vector<16x128xf32>
    %22 = arith.mulf %11, %21 : vector<16x128xf32>
    %23 = arith.truncf %22 : vector<16x128xf32> to vector<16x128xbf16>
    %c0_10 = arith.constant 0 : index
    %c0_11 = arith.constant 0 : index
    %24 = vector.load %arg10[%c0_10, %c0_11] : memref<16x32xf32, #tpu.memory_space<vmem>>, vector<16x32xf32>
    %c0_12 = arith.constant 0 : index
    %c0_13 = arith.constant 0 : index
    %25 = vector.load %arg5[%c0_12, %c0_13] : memref<128x32xbf16, #tpu.memory_space<vmem>>, vector<128x32xbf16>
    %cst_14 = arith.constant dense<0.000000e+00> : vector<16x32xf32>
    %26 = tpu.matmul %23, %25, %cst_14 {dimension_numbers = #tpu.dot_dimension_numbers<[1], [0], [0], [1], [0, 0, 1, 1], [], []>} : vector<16x128xbf16>, vector<128x32xbf16>, vector<16x32xf32> -> vector<16x32xf32>
    %27 = arith.addf %24, %26 : vector<16x32xf32>
    %c0_15 = arith.constant 0 : index
    %c0_16 = arith.constant 0 : index
    %28 = vector.load %arg10[%c0_15, %c0_16] : memref<16x32xf32, #tpu.memory_space<vmem>>, vector<16x32xf32>
    tpu.vector_store %arg10[%c0_15, %c0_16], %27 {strides = array<i32>} : memref<16x32xf32, #tpu.memory_space<vmem>>, vector<16x32xf32>,
    %c0_i32_17 = arith.constant 0 : i32
    %29 = arith.cmpi eq, %arg1, %c0_i32_17 : i32
    %30 = arith.extui %29 : i1 to i32
    %c0_i32_18 = arith.constant 0 : i32
    %31 = arith.cmpi ne, %30, %c0_i32_18 : i32
    scf.if %31 {
      %c0_19 = arith.constant 0 : index
      %c0_20 = arith.constant 0 : index
      %32 = vector.load %arg10[%c0_19, %c0_20] : memref<16x32xf32, #tpu.memory_space<vmem>>, vector<16x32xf32>
      %c0_21 = arith.constant 0 : index
      %c0_22 = arith.constant 0 : index
      %33 = vector.load %arg6[%c0_21, %c0_22] : memref<1x32xf32, #tpu.memory_space<vmem>>, vector<1x32xf32>
      %34 = vector.broadcast %33 : vector<1x32xf32> to vector<16x32xf32>
      %35 = arith.addf %32, %34 : vector<16x32xf32>
      %36 = arith.addf %35, %3 : vector<16x32xf32>
      %cst_23 = arith.constant dense<0.000000e+00> : vector<16xf32>
      %37 = vector.multi_reduction <add>, %36, %cst_23 [1] : vector<16x32xf32> to vector<16xf32>
      %38 = vector.shape_cast %37 : vector<16xf32> to vector<16x1xf32>
      %39 = arith.mulf %36, %36 : vector<16x32xf32>
      %cst_24 = arith.constant dense<0.000000e+00> : vector<16xf32>
      %40 = vector.multi_reduction <add>, %39, %cst_24 [1] : vector<16x32xf32> to vector<16xf32>
      %41 = vector.shape_cast %40 : vector<16xf32> to vector<16x1xf32>
      %cst_25 = arith.constant 3.125000e-02 : f32
      %42 = vector.broadcast %cst_25 : f32 to vector<16x1xf32>
      %43 = arith.mulf %38, %42 : vector<16x1xf32>
      %cst_26 = arith.constant 3.125000e-02 : f32
      %44 = vector.broadcast %cst_26 : f32 to vector<16x1xf32>
      %45 = arith.mulf %41, %44 : vector<16x1xf32>
      %46 = arith.mulf %43, %43 : vector<16x1xf32>
      %47 = arith.subf %45, %46 : vector<16x1xf32>
      %cst_27 = arith.constant 0.000000e+00 : f32
      %48 = vector.broadcast %cst_27 : f32 to vector<16x1xf32>
      %49 = arith.maximumf %47, %48 : vector<16x1xf32>
      %50 = vector.broadcast %43 : vector<16x1xf32> to vector<16x32xf32>
      %51 = arith.subf %36, %50 : vector<16x32xf32>
      %cst_28 = arith.constant 9.99999971E-10 : f32
      %52 = vector.broadcast %cst_28 : f32 to vector<16x1xf32>
      %53 = arith.addf %49, %52 : vector<16x1xf32>
      %54 = math.rsqrt %53 : vector<16x1xf32>
      %55 = vector.broadcast %54 : vector<16x1xf32> to vector<16x32xf32>
      %56 = arith.mulf %51, %55 : vector<16x32xf32>
      %c0_29 = arith.constant 0 : index
      %c0_30 = arith.constant 0 : index
      %57 = vector.load %arg7[%c0_29, %c0_30] : memref<1x32xf32, #tpu.memory_space<vmem>>, vector<1x32xf32>
      %58 = vector.broadcast %57 : vector<1x32xf32> to vector<16x32xf32>
      %59 = arith.mulf %56, %58 : vector<16x32xf32>
      %c0_31 = arith.constant 0 : index
      %c0_32 = arith.constant 0 : index
      %60 = vector.load %arg8[%c0_31, %c0_32] : memref<1x32xf32, #tpu.memory_space<vmem>>, vector<1x32xf32>
      %61 = vector.broadcast %60 : vector<1x32xf32> to vector<16x32xf32>
      %62 = arith.addf %59, %61 : vector<16x32xf32>
      %c0_33 = arith.constant 0 : index
      %c0_34 = arith.constant 0 : index
      %63 = vector.load %arg9[%c0_33, %c0_34] : memref<16x32xf32, #tpu.memory_space<vmem>>, vector<16x32xf32>
      tpu.vector_store %arg9[%c0_33, %c0_34], %62 {strides = array<i32>} : memref<16x32xf32, #tpu.memory_space<vmem>>, vector<16x32xf32>,
    } else {
    }
    return
  }
  func.func @transform_0(%arg0: i32, %arg1: i32) -> (i32, i32) {
    %c0_i32 = arith.constant 0 : i32
    %c0_i32_0 = arith.constant 0 : i32
    return %arg0, %c0_i32 : i32, i32
  }
  func.func @transform_1(%arg0: i32, %arg1: i32) -> (i32, i32) {
    %c0_i32 = arith.constant 0 : i32
    %c0_i32_0 = arith.constant 0 : i32
    return %c0_i32, %arg1 : i32, i32
  }
  func.func @transform_2(%arg0: i32, %arg1: i32) -> (i32, i32) {
    %c0_i32 = arith.constant 0 : i32
    %c0_i32_0 = arith.constant 0 : i32
    return %c0_i32, %arg1 : i32, i32
  }
  func.func @transform_3(%arg0: i32, %arg1: i32) -> (i32, i32) {
    %c0_i32 = arith.constant 0 : i32
    %c0_i32_0 = arith.constant 0 : i32
    return %arg1, %c0_i32 : i32, i32
  }
  func.func @transform_4(%arg0: i32, %arg1: i32) -> (i32, i32) {
    %c0_i32 = arith.constant 0 : i32
    %c0_i32_0 = arith.constant 0 : i32
    %c0_i32_1 = arith.constant 0 : i32
    return %c0_i32, %c0_i32_0 : i32, i32
  }
  func.func @transform_5(%arg0: i32, %arg1: i32) -> (i32, i32) {
    %c0_i32 = arith.constant 0 : i32
    %c0_i32_0 = arith.constant 0 : i32
    %c0_i32_1 = arith.constant 0 : i32
    return %c0_i32, %c0_i32_0 : i32, i32
  }
  func.func @transform_6(%arg0: i32, %arg1: i32) -> (i32, i32) {
    %c0_i32 = arith.constant 0 : i32
    %c0_i32_0 = arith.constant 0 : i32
    %c0_i32_1 = arith.constant 0 : i32
    return %c0_i32, %c0_i32_0 : i32, i32
  }
  func.func @transform_7(%arg0: i32, %arg1: i32) -> (i32, i32) {
    %c0_i32 = arith.constant 0 : i32
    %c0_i32_0 = arith.constant 0 : i32
    return %arg0, %c0_i32 : i32, i32
  }
}

</mosaic_0001>

<llo_original>
// kernel: tpu_custom_call.1
$region0: #{tpu_custom_call.1}
  #allocation0 [shape = 'u32[]', space=smem, size = 0x4, offset = 0x4, fixed_abs, tag = 'smem constant byte address 0x4 - core index']
  #allocation1 [shape = 'u32[144,128]{1,0:T(1,128)}', space=vmem, size = 0x12000, scoped, tag = 'internal scratch']
  #allocation2 [shape = 'f32[16,32]{1,0:T(8,128)}', space=vmem, size = 0x2000, scoped, tag = 'scratch operand']
  %s0 = inlined_call_operand.hbm [shape: f32[16,32], index: 0, kind: input, shape index: {}]
  %s1 = inlined_call_operand.hbm [shape: bf16[32,128], index: 1, kind: input, shape index: {}]
  %s2 = inlined_call_operand.hbm [shape: f32[1,128], index: 2, kind: input, shape index: {}]
  %s3 = inlined_call_operand.hbm [shape: bf16[128,32], index: 3, kind: input, shape index: {}]
  %s4 = inlined_call_operand.hbm [shape: f32[1,32], index: 4, kind: input, shape index: {}]
  %s5 = inlined_call_operand.hbm [shape: f32[1,32], index: 5, kind: input, shape index: {}]
  %s6 = inlined_call_operand.hbm [shape: f32[1,32], index: 6, kind: input, shape index: {}]
  %s7 = inlined_call_operand.hbm [shape: f32[16,32], index: 7, kind: output, shape index: {}]
  %s8 = sld [smem:[#allocation0]]
  $region74: #{tpu_custom_call.1} parent=0
    _
  %s10 = ssub.s32 1, %s8
  %s11 = scalar_select 0, %s10, %s8
  $region1: #{tpu_custom_call.1} parent=0
    #allocation3 [shape = 'u8[8192]{0}', space=vmem, size = 0x2000, scoped, tag = 'input window, operand 0, single buffered']
    #allocation4 [shape = 's32[1]{0}', space=sflag, size = 0x4, scoped, tag = 'scoped memory for tpu_custom_call.1']
    #allocation5 [shape = 's32[1]{0}', space=sflag, size = 0x4, scoped, tag = 'scoped memory for tpu_custom_call.1']
    #allocation6 [shape = 'u8[8192]{0}', space=vmem, size = 0x2000, scoped, tag = 'input window, operand 1, single buffered']
    #allocation7 [shape = 's32[1]{0}', space=sflag, size = 0x4, scoped, tag = 'scoped memory for tpu_custom_call.1']
    #allocation8 [shape = 'u8[512]{0}', space=vmem, size = 0x400, scoped, tag = 'input window, operand 2, single buffered']
    #allocation9 [shape = 'u8[32768]{0}', space=vmem, size = 0x8000, scoped, tag = 'input window, operand 3, single buffered']
    #allocation10 [shape = 's32[1]{0}', space=sflag, size = 0x4, scoped, tag = 'scoped memory for tpu_custom_call.1']
    #allocation11 [shape = 'u8[512]{0}', space=vmem, size = 0x400, scoped, tag = 'input window, operand 4, single buffered']
    #allocation12 [shape = 'u8[512]{0}', space=vmem, size = 0x400, scoped, tag = 'input window, operand 5, single buffered']
    #allocation13 [shape = 's32[1]{0}', space=sflag, size = 0x4, scoped, tag = 'scoped memory for tpu_custom_call.1']
    #allocation14 [shape = 'u8[512]{0}', space=vmem, size = 0x400, scoped, tag = 'input window, operand 6, single buffered']
    #allocation15 [shape = 'u8[8192]{0}', space=vmem, size = 0x2000, scoped, tag = 'output window, operand 0, single buffered']
    %12 = vsyncpa [#allocation4], 0
    %13 = vsyncpa [#allocation7], 0
    %14 = vsyncpa [#allocation10], 0
    %15 = vsyncpa [#allocation13], 0
    %16 = vsyncpa [#allocation5], 0
    // Predicated region
    $region2: #{tpu_custom_call.1} parent=1 // pred_check
      _
    $region3: #{tpu_custom_call.1} parent=1 // pred_check_branch
      %18 = sbr.rel (0) target = $region5
    $region4: #{tpu_custom_call.1} parent=1 // pred_region
      %s20 = ssub.s32 256, 256
      %21 = vsyncadd [#allocation4], %s20
      %s22 = sshll.u32 [#allocation3], 4
      %s23 = int_to_ptr.vmem [resolvable:$true] %s22
      %28 = dma.hbm_to_vmem [thread:$0]  %s0, 256, %s23, [#allocation4], 128, 128, 8
    $region5: #{tpu_custom_call.1} parent=1 // pred_fallthru
      _
    // Predicated region
    $region6: #{tpu_custom_call.1} parent=1 // pred_check
      _
    $region7: #{tpu_custom_call.1} parent=1 // pred_check_branch
      %30 = sbr.rel (0) target = $region9
    $region8: #{tpu_custom_call.1} parent=1 // pred_region
      %s32 = ssub.s32 256, 256
      %33 = vsyncadd [#allocation7], %s32
      %s34 = sshll.u32 [#allocation6], 4
      %s35 = int_to_ptr.vmem [resolvable:$true] %s34
      %40 = dma.hbm_to_vmem [thread:$0]  %s1, 256, %s35, [#allocation7], 64, 64, 4
    $region9: #{tpu_custom_call.1} parent=1 // pred_fallthru
      _
    // Predicated region
    $region10: #{tpu_custom_call.1} parent=1 // pred_check
      _
    $region11: #{tpu_custom_call.1} parent=1 // pred_check_branch
      %42 = sbr.rel (0) target = $region13
    $region12: #{tpu_custom_call.1} parent=1 // pred_region
      %s44 = ssub.s32 16, 16
      %45 = vsyncadd [#allocation7], %s44
      %s47 = sshll.u32 [#allocation8], 4
      %s48 = int_to_ptr.vmem [resolvable:$true] %s47
      %50 = dma.hbm_to_vmem [thread:$0]  %s2, 16, %s48, [#allocation7]
    $region13: #{tpu_custom_call.1} parent=1 // pred_fallthru
      _
    // Predicated region
    $region14: #{tpu_custom_call.1} parent=1 // pred_check
      _
    $region15: #{tpu_custom_call.1} parent=1 // pred_check_branch
      %52 = sbr.rel (0) target = $region17
    $region16: #{tpu_custom_call.1} parent=1 // pred_region
      %s54 = ssub.s32 1024, 1024
      %55 = vsyncadd [#allocation10], %s54
      %s56 = sshll.u32 [#allocation9], 4
      %s57 = int_to_ptr.vmem [resolvable:$true] %s56
      %62 = dma.hbm_to_vmem [thread:$0]  %s3, 1024, %s57, [#allocation10], 64, 64, 4
    $region17: #{tpu_custom_call.1} parent=1 // pred_fallthru
      _
    // Predicated region
    $region18: #{tpu_custom_call.1} parent=1 // pred_check
      _
    $region19: #{tpu_custom_call.1} parent=1 // pred_check_branch
      %64 = sbr.rel (0) target = $region21
    $region20: #{tpu_custom_call.1} parent=1 // pred_region
      %s66 = ssub.s32 16, 16
      %67 = vsyncadd [#allocation10], %s66
      %s69 = sshll.u32 [#allocation11], 4
      %s70 = int_to_ptr.vmem [resolvable:$true] %s69
      %72 = dma.hbm_to_vmem [thread:$0]  %s4, 16, %s70, [#allocation10]
    $region21: #{tpu_custom_call.1} parent=1 // pred_fallthru
      _
    // Predicated region
    $region22: #{tpu_custom_call.1} parent=1 // pred_check
      _
    $region23: #{tpu_custom_call.1} parent=1 // pred_check_branch
      %74 = sbr.rel (0) target = $region25
    $region24: #{tpu_custom_call.1} parent=1 // pred_region
      %s76 = ssub.s32 16, 16
      %77 = vsyncadd [#allocation13], %s76
      %s79 = sshll.u32 [#allocation12], 4
      %s80 = int_to_ptr.vmem [resolvable:$true] %s79
      %82 = dma.hbm_to_vmem [thread:$0]  %s5, 16, %s80, [#allocation13]
    $region25: #{tpu_custom_call.1} parent=1 // pred_fallthru
      _
    // Predicated region
    $region26: #{tpu_custom_call.1} parent=1 // pred_check
      _
    $region27: #{tpu_custom_call.1} parent=1 // pred_check_branch
      %84 = sbr.rel (0) target = $region29
    $region28: #{tpu_custom_call.1} parent=1 // pred_region
      %s86 = ssub.s32 16, 16
      %87 = vsyncadd [#allocation13], %s86
      %s89 = sshll.u32 [#allocation14], 4
      %s90 = int_to_ptr.vmem [resolvable:$true] %s89
      %92 = dma.hbm_to_vmem [thread:$0]  %s6, 16, %s90, [#allocation13]
    $region29: #{tpu_custom_call.1} parent=1 // pred_fallthru
      _
    // Predicated region
    $region30: #{tpu_custom_call.1} parent=1 // pred_check
      _
    $region31: #{tpu_custom_call.1} parent=1 // pred_check_branch
      %94 = sbr.rel (0) target = $region33
    $region32: #{tpu_custom_call.1} parent=1 // pred_region
      %95 = dma.done [#allocation4], 256
    $region33: #{tpu_custom_call.1} parent=1 // pred_fallthru
      _
    // Predicated region
    $region34: #{tpu_custom_call.1} parent=1 // pred_check
      _
    $region35: #{tpu_custom_call.1} parent=1 // pred_check_branch
      %97 = sbr.rel (0) target = $region37
    $region36: #{tpu_custom_call.1} parent=1 // pred_region
      %98 = dma.done [#allocation7], 256
    $region37: #{tpu_custom_call.1} parent=1 // pred_fallthru
      _
    // Predicated region
    $region38: #{tpu_custom_call.1} parent=1 // pred_check
      _
    $region39: #{tpu_custom_call.1} parent=1 // pred_check_branch
      %100 = sbr.rel (0) target = $region41
    $region40: #{tpu_custom_call.1} parent=1 // pred_region
      %101 = dma.done [#allocation7], 16
    $region41: #{tpu_custom_call.1} parent=1 // pred_fallthru
      _
    // Predicated region
    $region42: #{tpu_custom_call.1} parent=1 // pred_check
      _
    $region43: #{tpu_custom_call.1} parent=1 // pred_check_branch
      %103 = sbr.rel (0) target = $region45
    $region44: #{tpu_custom_call.1} parent=1 // pred_region
      %104 = dma.done [#allocation10], 1024
    $region45: #{tpu_custom_call.1} parent=1 // pred_fallthru
      _
    // Predicated region
    $region46: #{tpu_custom_call.1} parent=1 // pred_check
      _
    $region47: #{tpu_custom_call.1} parent=1 // pred_check_branch
      %106 = sbr.rel (0) target = $region49
    $region48: #{tpu_custom_call.1} parent=1 // pred_region
      %107 = dma.done [#allocation10], 16
    $region49: #{tpu_custom_call.1} parent=1 // pred_fallthru
      _
    // Predicated region
    $region50: #{tpu_custom_call.1} parent=1 // pred_check
      _
    $region51: #{tpu_custom_call.1} parent=1 // pred_check_branch
      %109 = sbr.rel (0) target = $region53
    $region52: #{tpu_custom_call.1} parent=1 // pred_region
      %110 = dma.done [#allocation13], 16
    $region53: #{tpu_custom_call.1} parent=1 // pred_fallthru
      _
    // Predicated region
    $region54: #{tpu_custom_call.1} parent=1 // pred_check
      _
    $region55: #{tpu_custom_call.1} parent=1 // pred_check_branch
      %112 = sbr.rel (0) target = $region57
    $region56: #{tpu_custom_call.1} parent=1 // pred_region
      %113 = dma.done [#allocation13], 16
    $region57: #{tpu_custom_call.1} parent=1 // pred_fallthru
      _
    %p115 = scmp.eq.s32.totalorder 0, 0
    // Predicated region
    $region58: #{tpu_custom_call.1} parent=1 // pred_check
      %p116 = pneg %p115
    $region59: #{tpu_custom_call.1} parent=1 // pred_check_branch
      %118 = sbr.rel (%p116) target = $region61
    $region60: #{tpu_custom_call.1} parent=1 // pred_region
      %vm119 = vcmask 261120
      %120 = vst.msk [vmem:[#allocation2] sm:$0xff] %vm119, 0.0
      %121 = vst.msk [vmem:[#allocation2 + $0x8] sm:$0xff] %vm119, 0.0
    $region61: #{tpu_custom_call.1} parent=1 // pred_fallthru
      _
    %v122 = vld [vmem:[#allocation3] sm:$0xff]
    %v123 = vld [vmem:[#allocation3 + $0x8] sm:$0xff]
    %v124 = vpack.c.bf16 %v123, %v122
    %v125 = vld [vmem:[#allocation6] sm:$0xf]
    %v126 = vld [vmem:[#allocation6 + $0x4] sm:$0xf]
    %v127 = vld [vmem:[#allocation6 + $0x8] sm:$0xf]
    %v128 = vld [vmem:[#allocation6 + $0xc] sm:$0xf]
    %v129 = vld [vmem:[#allocation8] sm:$0x1]
    %v131 = vlaneseq
    %v132 = vshrl.u32 %v131, 7
    %v133 = vsub.s32 0, %v132
    %v134 = vrot.slane %v129, %v133
    %v140 = vunpack.c.l.b16 %v125
    %v141 = vunpack.c.l.b16 %v126
    %v142 = vunpack.c.l.b16 %v127
    %v143 = vunpack.c.l.b16 %v128
    %v144 = vpack.c.b16 %v141, %v140
    %v145 = vpack.c.b16 %v143, %v142
    %vm148 = vcmask 261120
    %v150 = vsel %vm148, %v124, 0
    %152 = vmatprep.subr.bf16.mxu0 0
    %153 = vmatpush1.bf16.msra.mxu0 %v144
    %154 = vmatprep.subr.bf16.mxu0 0
    %155 = vmatpush1.bf16.msra.mxu0 %v145
    %156 = vmatprep.subr.bf16.mxu0 0
    %157 = vmatpush1.bf16.msra.mxu0 0
    %158 = vmatprep.subr.bf16.mxu0 0
    %159 = vmatpush1.bf16.msra.mxu0 0
    %160 = vmatprep.subr.bf16.mxu0 0
    %161 = vmatpush1.bf16.msra.mxu0 0
    %162 = vmatprep.subr.bf16.mxu0 0
    %163 = vmatpush1.bf16.msra.mxu0 0
    %164 = vmatprep.subr.bf16.mxu0 0
    %165 = vmatpush1.bf16.msra.mxu0 0
    %166 = vmatprep.subr.bf16.mxu0 0
    %167 = vmatpush1.bf16.msra.mxu0 0
    %168 = vmatprep.subr.bf16.mxu0 0
    %169 = vmatpush1.bf16.msra.mxu0 0
    %170 = vmatprep.subr.bf16.mxu0 0
    %171 = vmatpush1.bf16.msra.mxu0 0
    %172 = vmatprep.subr.bf16.mxu0 0
    %173 = vmatpush1.bf16.msra.mxu0 0
    %174 = vmatprep.subr.bf16.mxu0 0
    %175 = vmatpush1.bf16.msra.mxu0 0
    %176 = vmatprep.subr.bf16.mxu0 0
    %177 = vmatpush1.bf16.msra.mxu0 0
    %178 = vmatprep.subr.bf16.mxu0 0
    %179 = vmatpush1.bf16.msra.mxu0 0
    %180 = vmatprep.subr.bf16.mxu0 0
    %181 = vmatpush1.bf16.msra.mxu0 0
    %182 = vmatprep.subr.bf16.mxu0 0
    %183 = vmatpush1.bf16.msra.mxu0 0
    %184 = vmatprep.mubr.bf16.mxu0 0
    %185 = vmatmul.mubr.bf16.gmra.mrb[0].mxu0 %v150
    %v186 = vpop.f32.mrb[0].mxu0
    %v187 = vadd.f32 %v134, %v186
    %v188 = vpop.f32.mrb[0].mxu0
    %v189 = vpop.f32.mrb[0].mxu0
    %v190 = vadd.f32 %v134, %v189
    %v191 = vpop.f32.mrb[0].mxu0
    %192 = vdwg.mxu0
    %v193 = vmul.f32 %v187, 0.5
    %v194 = vmul.f32 %v190, 0.5
    %v195 = vmul.f32 %v187, 0.044715
    %v196 = vmul.f32 %v190, 0.044715
    %v197 = vmul.f32 %v195, %v187
    %v198 = vmul.f32 %v196, %v190
    %v199 = vmul.f32 %v197, %v187
    %v200 = vmul.f32 %v198, %v190
    %v201 = vadd.f32 %v187, %v199
    %v202 = vadd.f32 %v190, %v200
    %v203 = vmul.f32 %v201, 0.7978846
    %v204 = vmul.f32 %v202, 0.7978846
    %v205 = vtanh.pop %v203
    %v206 = vtanh.pop %v204
    %v207 = vadd.f32 %v205, 1.0
    %v208 = vadd.f32 %v206, 1.0
    %v209 = vmul.f32 %v193, %v207
    %v210 = vmul.f32 %v194, %v208
    %v211 = vpack.c.bf16 %v210, %v209
    %v212 = vld [vmem:[#allocation2] sm:$0xff]
    %v213 = vld [vmem:[#allocation2 + $0x8] sm:$0xff]
    %v214 = vld [vmem:[#allocation9] sm:$0xf]
    %v215 = vld [vmem:[#allocation9 + $0x4] sm:$0xf]
    %v216 = vld [vmem:[#allocation9 + $0x8] sm:$0xf]
    %v217 = vld [vmem:[#allocation9 + $0xc] sm:$0xf]
    %v218 = vld [vmem:[#allocation9 + $0x10] sm:$0xf]
    %v219 = vld [vmem:[#allocation9 + $0x14] sm:$0xf]
    %v220 = vld [vmem:[#allocation9 + $0x18] sm:$0xf]
    %v221 = vld [vmem:[#allocation9 + $0x1c] sm:$0xf]
    %v222 = vld [vmem:[#allocation9 + $0x20] sm:$0xf]
    %v223 = vld [vmem:[#allocation9 + $0x24] sm:$0xf]
    %v224 = vld [vmem:[#allocation9 + $0x28] sm:$0xf]
    %v225 = vld [vmem:[#allocation9 + $0x2c] sm:$0xf]
    %v226 = vld [vmem:[#allocation9 + $0x30] sm:$0xf]
    %v227 = vld [vmem:[#allocation9 + $0x34] sm:$0xf]
    %v228 = vld [vmem:[#allocation9 + $0x38] sm:$0xf]
    %v229 = vld [vmem:[#allocation9 + $0x3c] sm:$0xf]
    %v246 = vunpack.c.l.b16 %v214
    %v247 = vunpack.c.l.b16 %v215
    %v248 = vunpack.c.l.b16 %v216
    %v249 = vunpack.c.l.b16 %v217
    %v250 = vunpack.c.l.b16 %v218
    %v251 = vunpack.c.l.b16 %v219
    %v252 = vunpack.c.l.b16 %v220
    %v253 = vunpack.c.l.b16 %v221
    %v254 = vunpack.c.l.b16 %v222
    %v255 = vunpack.c.l.b16 %v223
    %v256 = vunpack.c.l.b16 %v224
    %v257 = vunpack.c.l.b16 %v225
    %v258 = vunpack.c.l.b16 %v226
    %v259 = vunpack.c.l.b16 %v227
    %v260 = vunpack.c.l.b16 %v228
    %v261 = vunpack.c.l.b16 %v229
    %v262 = vpack.c.b16 %v247, %v246
    %v263 = vpack.c.b16 %v249, %v248
    %v264 = vpack.c.b16 %v251, %v250
    %v265 = vpack.c.b16 %v253, %v252
    %v266 = vpack.c.b16 %v255, %v254
    %v267 = vpack.c.b16 %v257, %v256
    %v268 = vpack.c.b16 %v259, %v258
    %v269 = vpack.c.b16 %v261, %v260
    %278 = vmatprep.subr.bf16.mxu0 0
    %279 = vmatpush1.bf16.msra.mxu0 %v262
    %280 = vmatprep.subr.bf16.mxu0 0
    %281 = vmatpush1.bf16.msra.mxu0 %v263
    %282 = vmatprep.subr.bf16.mxu0 0
    %283 = vmatpush1.bf16.msra.mxu0 %v264
    %284 = vmatprep.subr.bf16.mxu0 0
    %285 = vmatpush1.bf16.msra.mxu0 %v265
    %286 = vmatprep.subr.bf16.mxu0 0
    %287 = vmatpush1.bf16.msra.mxu0 %v266
    %288 = vmatprep.subr.bf16.mxu0 0
    %289 = vmatpush1.bf16.msra.mxu0 %v267
    %290 = vmatprep.subr.bf16.mxu0 0
    %291 = vmatpush1.bf16.msra.mxu0 %v268
    %292 = vmatprep.subr.bf16.mxu0 0
    %293 = vmatpush1.bf16.msra.mxu0 %v269
    %294 = vmatprep.subr.bf16.mxu0 0
    %295 = vmatpush1.bf16.msra.mxu0 0
    %296 = vmatprep.subr.bf16.mxu0 0
    %297 = vmatpush1.bf16.msra.mxu0 0
    %298 = vmatprep.subr.bf16.mxu0 0
    %299 = vmatpush1.bf16.msra.mxu0 0
    %300 = vmatprep.subr.bf16.mxu0 0
    %301 = vmatpush1.bf16.msra.mxu0 0
    %302 = vmatprep.subr.bf16.mxu0 0
    %303 = vmatpush1.bf16.msra.mxu0 0
    %304 = vmatprep.subr.bf16.mxu0 0
    %305 = vmatpush1.bf16.msra.mxu0 0
    %306 = vmatprep.subr.bf16.mxu0 0
    %307 = vmatpush1.bf16.msra.mxu0 0
    %308 = vmatprep.subr.bf16.mxu0 0
    %309 = vmatpush1.bf16.msra.mxu0 0
    %310 = vmatprep.mubr.bf16.mxu0 0
    %311 = vmatmul.mubr.bf16.gmra.mrb[0].mxu0 %v211
    %v312 = vpop.f32.mrb[0].mxu0
    %v313 = vadd.f32 0.0, %v312
    %v314 = vpop.f32.mrb[0].mxu0
    %v315 = vpop.f32.mrb[0].mxu0
    %v316 = vadd.f32 0.0, %v315
    %v317 = vpop.f32.mrb[0].mxu0
    %318 = vdwg.mxu0
    %v319 = vadd.f32 %v212, %v313
    %v320 = vadd.f32 %v213, %v316
    %321 = vst.msk [vmem:[#allocation2] sm:$0xff] %vm148, %v319
    %322 = vst.msk [vmem:[#allocation2 + $0x8] sm:$0xff] %vm148, %v320
    // Predicated region
    $region62: #{tpu_custom_call.1} parent=1 // pred_check
      %p323 = pneg %p115
    $region63: #{tpu_custom_call.1} parent=1 // pred_check_branch
      %325 = sbr.rel (%p323) target = $region65
    $region64: #{tpu_custom_call.1} parent=1 // pred_region
      %v326 = vld [vmem:[#allocation2] sm:$0xff]
      %v327 = vld [vmem:[#allocation2 + $0x8] sm:$0xff]
      %v328 = vld [vmem:[#allocation11] sm:$0x1]
      %v330 = vlaneseq
      %v331 = vshrl.u32 %v330, 7
      %v332 = vsub.s32 0, %v331
      %v333 = vrot.slane %v328, %v332
      %v335 = vadd.f32 %v326, %v333
      %v336 = vadd.f32 %v327, %v333
      %v337 = vadd.f32 %v335, %v122
      %v338 = vadd.f32 %v336, %v123
      %v339 = vsel %vm148, %v337, 0.0
      %340 = vadd.xlane.f32.xlu0 %v339
      %v341 = vpop.xlane.xlu0 %340
      %v342 = vsel %vm148, %v338, 0.0
      %343 = vadd.xlane.f32.xlu0 %v342
      %v344 = vpop.xlane.xlu0 %343
      %v345 = vmul.f32 %v337, %v337
      %v346 = vmul.f32 %v338, %v338
      %v347 = vsel %vm148, %v345, 0.0
      %348 = vadd.xlane.f32.xlu0 %v347
      %v349 = vpop.xlane.xlu0 %348
      %v350 = vsel %vm148, %v346, 0.0
      %351 = vadd.xlane.f32.xlu0 %v350
      %v352 = vpop.xlane.xlu0 %351
      %v353 = vmul.f32 %v341, 0.03125
      %v354 = vmul.f32 %v344, 0.03125
      %v355 = vmul.f32 %v349, 0.03125
      %v356 = vmul.f32 %v352, 0.03125
      %v357 = vmul.f32 %v353, %v353
      %v358 = vmul.f32 %v354, %v354
      %v359 = vsub.f32 %v355, %v357
      %v360 = vsub.f32 %v356, %v358
      %v361 = vmax.f32 %v359, 0.0
      %v362 = vmax.f32 %v360, 0.0
      %v363 = vsub.f32 %v337, %v353
      %v364 = vsub.f32 %v338, %v354
      %v365 = vadd.f32 %v361, 1e-09
      %v366 = vadd.f32 %v362, 1e-09
      %v367 = vrsqrt.pop %v365
      %v368 = vrsqrt.pop %v366
      %v369 = vmul.f32 %v363, %v367
      %v370 = vmul.f32 %v364, %v368
      %v371 = vld [vmem:[#allocation12] sm:$0x1]
      %v373 = vlaneseq
      %v374 = vshrl.u32 %v373, 7
      %v375 = vsub.s32 0, %v374
      %v376 = vrot.slane %v371, %v375
      %v378 = vmul.f32 %v369, %v376
      %v379 = vmul.f32 %v370, %v376
      %v380 = vld [vmem:[#allocation14] sm:$0x1]
      %v382 = vlaneseq
      %v383 = vshrl.u32 %v382, 7
      %v384 = vsub.s32 0, %v383
      %v385 = vrot.slane %v380, %v384
      %v387 = vadd.f32 %v378, %v385
      %v388 = vadd.f32 %v379, %v385
      %389 = vst.msk [vmem:[#allocation15] sm:$0xff] %vm148, %v387
      %390 = vst.msk [vmem:[#allocation15 + $0x8] sm:$0xff] %vm148, %v388
    $region65: #{tpu_custom_call.1} parent=1 // pred_fallthru
      _
    // Predicated region
    $region66: #{tpu_custom_call.1} parent=1 // pred_check
      _
    $region67: #{tpu_custom_call.1} parent=1 // pred_check_branch
      %392 = sbr.rel (0) target = $region69
    $region68: #{tpu_custom_call.1} parent=1 // pred_region
      %s394 = ssub.s32 256, 256
      %395 = vsyncadd [#allocation5], %s394
      %s396 = sshll.u32 [#allocation15], 4
      %s397 = int_to_ptr.vmem [resolvable:$true] %s396
      %402 = dma.vmem_to_hbm [thread:$0]  %s397, 256, %s7, [#allocation5], 128, 128, 8
    $region69: #{tpu_custom_call.1} parent=1 // pred_fallthru
      _
    // Predicated region
    $region70: #{tpu_custom_call.1} parent=1 // pred_check
      _
    $region71: #{tpu_custom_call.1} parent=1 // pred_check_branch
      %404 = sbr.rel (0) target = $region73
    $region72: #{tpu_custom_call.1} parent=1 // pred_region
      %405 = dma.done [#allocation5], 256
    $region73: #{tpu_custom_call.1} parent=1 // pred_fallthru
      _
    %406 = vsyncpa [#allocation4], 1
    %407 = vsyncpa [#allocation7], 1
    %408 = vsyncpa [#allocation10], 1
    %409 = vsyncpa [#allocation13], 1
    %410 = vsyncpa [#allocation5], 1

// kernel: tpu_custom_call.1
$region0: #{tpu_custom_call.1}
  #allocation0 [shape = 'u32[]', space=smem, size = 0x4, offset = 0x4, fixed_abs, tag = 'smem constant byte address 0x4 - core index']
  #allocation1 [shape = 'u32[144,128]{1,0:T(1,128)}', space=vmem, size = 0x12000, scoped, tag = 'internal scratch']
  #allocation2 [shape = 'f32[16,32]{1,0:T(8,128)}', space=vmem, size = 0x2000, scoped, tag = 'scratch operand']
  %s0 = inlined_call_operand.hbm [shape: f32[16,32], index: 0, kind: input, shape index: {}]
  %s1 = inlined_call_operand.hbm [shape: bf16[32,128], index: 1, kind: input, shape index: {}]
  %s2 = inlined_call_operand.hbm [shape: f32[1,128], index: 2, kind: input, shape index: {}]
  %s3 = inlined_call_operand.hbm [shape: bf16[128,32], index: 3, kind: input, shape index: {}]
  %s4 = inlined_call_operand.hbm [shape: f32[1,32], index: 4, kind: input, shape index: {}]
  %s5 = inlined_call_operand.hbm [shape: f32[1,32], index: 5, kind: input, shape index: {}]
  %s6 = inlined_call_operand.hbm [shape: f32[1,32], index: 6, kind: input, shape index: {}]
  %s7 = inlined_call_operand.hbm [shape: f32[16,32], index: 7, kind: output, shape index: {}]
  %s8 = sld [smem:[#allocation0]]
  $region74: #{tpu_custom_call.1} parent=0
    _
  %s10 = ssub.s32 1, %s8
  %s11 = scalar_select 0, %s10, %s8
  $region1: #{tpu_custom_call.1} parent=0
    #allocation3 [shape = 'u8[8192]{0}', space=vmem, size = 0x2000, scoped, tag = 'input window, operand 0, single buffered']
    #allocation4 [shape = 's32[1]{0}', space=sflag, size = 0x4, scoped, tag = 'scoped memory for tpu_custom_call.1']
    #allocation5 [shape = 's32[1]{0}', space=sflag, size = 0x4, scoped, tag = 'scoped memory for tpu_custom_call.1']
    #allocation6 [shape = 'u8[8192]{0}', space=vmem, size = 0x2000, scoped, tag = 'input window, operand 1, single buffered']
    #allocation7 [shape = 's32[1]{0}', space=sflag, size = 0x4, scoped, tag = 'scoped memory for tpu_custom_call.1']
    #allocation8 [shape = 'u8[512]{0}', space=vmem, size = 0x400, scoped, tag = 'input window, operand 2, single buffered']
    #allocation9 [shape = 'u8[32768]{0}', space=vmem, size = 0x8000, scoped, tag = 'input window, operand 3, single buffered']
    #allocation10 [shape = 's32[1]{0}', space=sflag, size = 0x4, scoped, tag = 'scoped memory for tpu_custom_call.1']
    #allocation11 [shape = 'u8[512]{0}', space=vmem, size = 0x400, scoped, tag = 'input window, operand 4, single buffered']
    #allocation12 [shape = 'u8[512]{0}', space=vmem, size = 0x400, scoped, tag = 'input window, operand 5, single buffered']
    #allocation13 [shape = 's32[1]{0}', space=sflag, size = 0x4, scoped, tag = 'scoped memory for tpu_custom_call.1']
    #allocation14 [shape = 'u8[512]{0}', space=vmem, size = 0x400, scoped, tag = 'input window, operand 6, single buffered']
    #allocation15 [shape = 'u8[8192]{0}', space=vmem, size = 0x2000, scoped, tag = 'output window, operand 0, single buffered']
    %12 = vsyncpa [#allocation4], 0
    %13 = vsyncpa [#allocation7], 0
    %14 = vsyncpa [#allocation10], 0
    %15 = vsyncpa [#allocation13], 0
    %16 = vsyncpa [#allocation5], 0
    // Predicated region
    $region2: #{tpu_custom_call.1} parent=1 // pred_check
      _
    $region3: #{tpu_custom_call.1} parent=1 // pred_check_branch
      %18 = sbr.rel (0) target = $region5
    $region4: #{tpu_custom_call.1} parent=1 // pred_region
      %s20 = ssub.s32 256, 256
      %21 = vsyncadd [#allocation4], %s20
      %s22 = sshll.u32 [#allocation3], 4
      %s23 = int_to_ptr.vmem [resolvable:$true] %s22
      %28 = dma.hbm_to_vmem [thread:$0]  %s0, 256, %s23, [#allocation4], 128, 128, 8
    $region5: #{tpu_custom_call.1} parent=1 // pred_fallthru
      _
    // Predicated region
    $region6: #{tpu_custom_call.1} parent=1 // pred_check
      _
    $region7: #{tpu_custom_call.1} parent=1 // pred_check_branch
      %30 = sbr.rel (0) target = $region9
    $region8: #{tpu_custom_call.1} parent=1 // pred_region
      %s32 = ssub.s32 256, 256
      %33 = vsyncadd [#allocation7], %s32
      %s34 = sshll.u32 [#allocation6], 4
      %s35 = int_to_ptr.vmem [resolvable:$true] %s34
      %40 = dma.hbm_to_vmem [thread:$0]  %s1, 256, %s35, [#allocation7], 64, 64, 4
    $region9: #{tpu_custom_call.1} parent=1 // pred_fallthru
      _
    // Predicated region
    $region10: #{tpu_custom_call.1} parent=1 // pred_check
      _
    $region11: #{tpu_custom_call.1} parent=1 // pred_check_branch
      %42 = sbr.rel (0) target = $region13
    $region12: #{tpu_custom_call.1} parent=1 // pred_region
      %s44 = ssub.s32 16, 16
      %45 = vsyncadd [#allocation7], %s44
      %s47 = sshll.u32 [#allocation8], 4
      %s48 = int_to_ptr.vmem [resolvable:$true] %s47
      %50 = dma.hbm_to_vmem [thread:$0]  %s2, 16, %s48, [#allocation7]
    $region13: #{tpu_custom_call.1} parent=1 // pred_fallthru
      _
    // Predicated region
    $region14: #{tpu_custom_call.1} parent=1 // pred_check
      _
    $region15: #{tpu_custom_call.1} parent=1 // pred_check_branch
      %52 = sbr.rel (0) target = $region17
    $region16: #{tpu_custom_call.1} parent=1 // pred_region
      %s54 = ssub.s32 1024, 1024
      %55 = vsyncadd [#allocation10], %s54
      %s56 = sshll.u32 [#allocation9], 4
      %s57 = int_to_ptr.vmem [resolvable:$true] %s56
      %62 = dma.hbm_to_vmem [thread:$0]  %s3, 1024, %s57, [#allocation10], 64, 64, 4
    $region17: #{tpu_custom_call.1} parent=1 // pred_fallthru
      _
    // Predicated region
    $region18: #{tpu_custom_call.1} parent=1 // pred_check
      _
    $region19: #{tpu_custom_call.1} parent=1 // pred_check_branch
      %64 = sbr.rel (0) target = $region21
    $region20: #{tpu_custom_call.1} parent=1 // pred_region
      %s66 = ssub.s32 16, 16
      %67 = vsyncadd [#allocation10], %s66
      %s69 = sshll.u32 [#allocation11], 4
      %s70 = int_to_ptr.vmem [resolvable:$true] %s69
      %72 = dma.hbm_to_vmem [thread:$0]  %s4, 16, %s70, [#allocation10]
    $region21: #{tpu_custom_call.1} parent=1 // pred_fallthru
      _
    // Predicated region
    $region22: #{tpu_custom_call.1} parent=1 // pred_check
      _
    $region23: #{tpu_custom_call.1} parent=1 // pred_check_branch
      %74 = sbr.rel (0) target = $region25
    $region24: #{tpu_custom_call.1} parent=1 // pred_region
      %s76 = ssub.s32 16, 16
      %77 = vsyncadd [#allocation13], %s76
      %s79 = sshll.u32 [#allocation12], 4
      %s80 = int_to_ptr.vmem [resolvable:$true] %s79
      %82 = dma.hbm_to_vmem [thread:$0]  %s5, 16, %s80, [#allocation13]
    $region25: #{tpu_custom_call.1} parent=1 // pred_fallthru
      _
    // Predicated region
    $region26: #{tpu_custom_call.1} parent=1 // pred_check
      _
    $region27: #{tpu_custom_call.1} parent=1 // pred_check_branch
      %84 = sbr.rel (0) target = $region29
    $region28: #{tpu_custom_call.1} parent=1 // pred_region
      %s86 = ssub.s32 16, 16
      %87 = vsyncadd [#allocation13], %s86
      %s89 = sshll.u32 [#allocation14], 4
      %s90 = int_to_ptr.vmem [resolvable:$true] %s89
      %92 = dma.hbm_to_vmem [thread:$0]  %s6, 16, %s90, [#allocation13]
    $region29: #{tpu_custom_call.1} parent=1 // pred_fallthru
      _
    // Predicated region
    $region30: #{tpu_custom_call.1} parent=1 // pred_check
      _
    $region31: #{tpu_custom_call.1} parent=1 // pred_check_branch
      %94 = sbr.rel (0) target = $region33
    $region32: #{tpu_custom_call.1} parent=1 // pred_region
      %95 = dma.done [#allocation4], 256
    $region33: #{tpu_custom_call.1} parent=1 // pred_fallthru
      _
    // Predicated region
    $region34: #{tpu_custom_call.1} parent=1 // pred_check
      _
    $region35: #{tpu_custom_call.1} parent=1 // pred_check_branch
      %97 = sbr.rel (0) target = $region37
    $region36: #{tpu_custom_call.1} parent=1 // pred_region
      %98 = dma.done [#allocation7], 256
    $region37: #{tpu_custom_call.1} parent=1 // pred_fallthru
      _
    // Predicated region
    $region38: #{tpu_custom_call.1} parent=1 // pred_check
      _
    $region39: #{tpu_custom_call.1} parent=1 // pred_check_branch
      %100 = sbr.rel (0) target = $region41
    $region40: #{tpu_custom_call.1} parent=1 // pred_region
      %101 = dma.done [#allocation7], 16
    $region41: #{tpu_custom_call.1} parent=1 // pred_fallthru
      _
    // Predicated region
    $region42: #{tpu_custom_call.1} parent=1 // pred_check
      _
    $region43: #{tpu_custom_call.1} parent=1 // pred_check_branch
      %103 = sbr.rel (0) target = $region45
    $region44: #{tpu_custom_call.1} parent=1 // pred_region
      %104 = dma.done [#allocation10], 1024
    $region45: #{tpu_custom_call.1} parent=1 // pred_fallthru
      _
    // Predicated region
    $region46: #{tpu_custom_call.1} parent=1 // pred_check
      _
    $region47: #{tpu_custom_call.1} parent=1 // pred_check_branch
      %106 = sbr.rel (0) target = $region49
    $region48: #{tpu_custom_call.1} parent=1 // pred_region
      %107 = dma.done [#allocation10], 16
    $region49: #{tpu_custom_call.1} parent=1 // pred_fallthru
      _
    // Predicated region
    $region50: #{tpu_custom_call.1} parent=1 // pred_check
      _
    $region51: #{tpu_custom_call.1} parent=1 // pred_check_branch
      %109 = sbr.rel (0) target = $region53
    $region52: #{tpu_custom_call.1} parent=1 // pred_region
      %110 = dma.done [#allocation13], 16
    $region53: #{tpu_custom_call.1} parent=1 // pred_fallthru
      _
    // Predicated region
    $region54: #{tpu_custom_call.1} parent=1 // pred_check
      _
    $region55: #{tpu_custom_call.1} parent=1 // pred_check_branch
      %112 = sbr.rel (0) target = $region57
    $region56: #{tpu_custom_call.1} parent=1 // pred_region
      %113 = dma.done [#allocation13], 16
    $region57: #{tpu_custom_call.1} parent=1 // pred_fallthru
      _
    %p115 = scmp.eq.s32.totalorder 0, 0
    // Predicated region
    $region58: #{tpu_custom_call.1} parent=1 // pred_check
      %p116 = pneg %p115
    $region59: #{tpu_custom_call.1} parent=1 // pred_check_branch
      %118 = sbr.rel (%p116) target = $region61
    $region60: #{tpu_custom_call.1} parent=1 // pred_region
      %vm119 = vcmask 261120
      %120 = vst.msk [vmem:[#allocation2] sm:$0xff] %vm119, 0.0
      %121 = vst.msk [vmem:[#allocation2 + $0x8] sm:$0xff] %vm119, 0.0
    $region61: #{tpu_custom_call.1} parent=1 // pred_fallthru
      _
    %v122 = vld [vmem:[#allocation3] sm:$0xff]
    %v123 = vld [vmem:[#allocation3 + $0x8] sm:$0xff]
    %v124 = vpack.c.bf16 %v123, %v122
    %v125 = vld [vmem:[#allocation6] sm:$0xf]
    %v126 = vld [vmem:[#allocation6 + $0x4] sm:$0xf]
    %v127 = vld [vmem:[#allocation6 + $0x8] sm:$0xf]
    %v128 = vld [vmem:[#allocation6 + $0xc] sm:$0xf]
    %v129 = vld [vmem:[#allocation8] sm:$0x1]
    %v131 = vlaneseq
    %v132 = vshrl.u32 %v131, 7
    %v133 = vsub.s32 0, %v132
    %v134 = vrot.slane %v129, %v133
    %v140 = vunpack.c.l.b16 %v125
    %v141 = vunpack.c.l.b16 %v126
    %v142 = vunpack.c.l.b16 %v127
    %v143 = vunpack.c.l.b16 %v128
    %v144 = vpack.c.b16 %v141, %v140
    %v145 = vpack.c.b16 %v143, %v142
    %vm148 = vcmask 261120
    %v150 = vsel %vm148, %v124, 0
    %152 = vmatprep.subr.bf16.mxu0 0
    %153 = vmatpush1.bf16.msra.mxu0 %v144
    %154 = vmatprep.subr.bf16.mxu0 0
    %155 = vmatpush1.bf16.msra.mxu0 %v145
    %156 = vmatprep.subr.bf16.mxu0 0
    %157 = vmatpush1.bf16.msra.mxu0 0
    %158 = vmatprep.subr.bf16.mxu0 0
    %159 = vmatpush1.bf16.msra.mxu0 0
    %160 = vmatprep.subr.bf16.mxu0 0
    %161 = vmatpush1.bf16.msra.mxu0 0
    %162 = vmatprep.subr.bf16.mxu0 0
    %163 = vmatpush1.bf16.msra.mxu0 0
    %164 = vmatprep.subr.bf16.mxu0 0
    %165 = vmatpush1.bf16.msra.mxu0 0
    %166 = vmatprep.subr.bf16.mxu0 0
    %167 = vmatpush1.bf16.msra.mxu0 0
    %168 = vmatprep.subr.bf16.mxu0 0
    %169 = vmatpush1.bf16.msra.mxu0 0
    %170 = vmatprep.subr.bf16.mxu0 0
    %171 = vmatpush1.bf16.msra.mxu0 0
    %172 = vmatprep.subr.bf16.mxu0 0
    %173 = vmatpush1.bf16.msra.mxu0 0
    %174 = vmatprep.subr.bf16.mxu0 0
    %175 = vmatpush1.bf16.msra.mxu0 0
    %176 = vmatprep.subr.bf16.mxu0 0
    %177 = vmatpush1.bf16.msra.mxu0 0
    %178 = vmatprep.subr.bf16.mxu0 0
    %179 = vmatpush1.bf16.msra.mxu0 0
    %180 = vmatprep.subr.bf16.mxu0 0
    %181 = vmatpush1.bf16.msra.mxu0 0
    %182 = vmatprep.subr.bf16.mxu0 0
    %183 = vmatpush1.bf16.msra.mxu0 0
    %184 = vmatprep.mubr.bf16.mxu0 0
    %185 = vmatmul.mubr.bf16.gmra.mrb[0].mxu0 %v150
    %v186 = vpop.f32.mrb[0].mxu0
    %v187 = vadd.f32 %v134, %v186
    %v188 = vpop.f32.mrb[0].mxu0
    %v189 = vpop.f32.mrb[0].mxu0
    %v190 = vadd.f32 %v134, %v189
    %v191 = vpop.f32.mrb[0].mxu0
    %192 = vdwg.mxu0
    %v193 = vmul.f32 %v187, 0.5
    %v194 = vmul.f32 %v190, 0.5
    %v195 = vmul.f32 %v187, 0.044715
    %v196 = vmul.f32 %v190, 0.044715
    %v197 = vmul.f32 %v195, %v187
    %v198 = vmul.f32 %v196, %v190
    %v199 = vmul.f32 %v197, %v187
    %v200 = vmul.f32 %v198, %v190
    %v201 = vadd.f32 %v187, %v199
    %v202 = vadd.f32 %v190, %v200
    %v203 = vmul.f32 %v201, 0.7978846
    %v204 = vmul.f32 %v202, 0.7978846
    %v205 = vtanh.pop %v203
    %v206 = vtanh.pop %v204
    %v207 = vadd.f32 %v205, 1.0
    %v208 = vadd.f32 %v206, 1.0
    %v209 = vmul.f32 %v193, %v207
    %v210 = vmul.f32 %v194, %v208
    %v211 = vpack.c.bf16 %v210, %v209
    %v212 = vld [vmem:[#allocation2] sm:$0xff]
    %v213 = vld [vmem:[#allocation2 + $0x8] sm:$0xff]
    %v214 = vld [vmem:[#allocation9] sm:$0xf]
    %v215 = vld [vmem:[#allocation9 + $0x4] sm:$0xf]
    %v216 = vld [vmem:[#allocation9 + $0x8] sm:$0xf]
    %v217 = vld [vmem:[#allocation9 + $0xc] sm:$0xf]
    %v218 = vld [vmem:[#allocation9 + $0x10] sm:$0xf]
    %v219 = vld [vmem:[#allocation9 + $0x14] sm:$0xf]
    %v220 = vld [vmem:[#allocation9 + $0x18] sm:$0xf]
    %v221 = vld [vmem:[#allocation9 + $0x1c] sm:$0xf]
    %v222 = vld [vmem:[#allocation9 + $0x20] sm:$0xf]
    %v223 = vld [vmem:[#allocation9 + $0x24] sm:$0xf]
    %v224 = vld [vmem:[#allocation9 + $0x28] sm:$0xf]
    %v225 = vld [vmem:[#allocation9 + $0x2c] sm:$0xf]
    %v226 = vld [vmem:[#allocation9 + $0x30] sm:$0xf]
    %v227 = vld [vmem:[#allocation9 + $0x34] sm:$0xf]
    %v228 = vld [vmem:[#allocation9 + $0x38] sm:$0xf]
    %v229 = vld [vmem:[#allocation9 + $0x3c] sm:$0xf]
    %v246 = vunpack.c.l.b16 %v214
    %v247 = vunpack.c.l.b16 %v215
    %v248 = vunpack.c.l.b16 %v216
    %v249 = vunpack.c.l.b16 %v217
    %v250 = vunpack.c.l.b16 %v218
    %v251 = vunpack.c.l.b16 %v219
    %v252 = vunpack.c.l.b16 %v220
    %v253 = vunpack.c.l.b16 %v221
    %v254 = vunpack.c.l.b16 %v222
    %v255 = vunpack.c.l.b16 %v223
    %v256 = vunpack.c.l.b16 %v224
    %v257 = vunpack.c.l.b16 %v225
    %v258 = vunpack.c.l.b16 %v226
    %v259 = vunpack.c.l.b16 %v227
    %v260 = vunpack.c.l.b16 %v228
    %v261 = vunpack.c.l.b16 %v229
    %v262 = vpack.c.b16 %v247, %v246
    %v263 = vpack.c.b16 %v249, %v248
    %v264 = vpack.c.b16 %v251, %v250
    %v265 = vpack.c.b16 %v253, %v252
    %v266 = vpack.c.b16 %v255, %v254
    %v267 = vpack.c.b16 %v257, %v256
    %v268 = vpack.c.b16 %v259, %v258
    %v269 = vpack.c.b16 %v261, %v260
    %278 = vmatprep.subr.bf16.mxu0 0
    %279 = vmatpush1.bf16.msra.mxu0 %v262
    %280 = vmatprep.subr.bf16.mxu0 0
    %281 = vmatpush1.bf16.msra.mxu0 %v263
    %282 = vmatprep.subr.bf16.mxu0 0
    %283 = vmatpush1.bf16.msra.mxu0 %v264
    %284 = vmatprep.subr.bf16.mxu0 0
    %285 = vmatpush1.bf16.msra.mxu0 %v265
    %286 = vmatprep.subr.bf16.mxu0 0
    %287 = vmatpush1.bf16.msra.mxu0 %v266
    %288 = vmatprep.subr.bf16.mxu0 0
    %289 = vmatpush1.bf16.msra.mxu0 %v267
    %290 = vmatprep.subr.bf16.mxu0 0
    %291 = vmatpush1.bf16.msra.mxu0 %v268
    %292 = vmatprep.subr.bf16.mxu0 0
    %293 = vmatpush1.bf16.msra.mxu0 %v269
    %294 = vmatprep.subr.bf16.mxu0 0
    %295 = vmatpush1.bf16.msra.mxu0 0
    %296 = vmatprep.subr.bf16.mxu0 0
    %297 = vmatpush1.bf16.msra.mxu0 0
    %298 = vmatprep.subr.bf16.mxu0 0
    %299 = vmatpush1.bf16.msra.mxu0 0
    %300 = vmatprep.subr.bf16.mxu0 0
    %301 = vmatpush1.bf16.msra.mxu0 0
    %302 = vmatprep.subr.bf16.mxu0 0
    %303 = vmatpush1.bf16.msra.mxu0 0
    %304 = vmatprep.subr.bf16.mxu0 0
    %305 = vmatpush1.bf16.msra.mxu0 0
    %306 = vmatprep.subr.bf16.mxu0 0
    %307 = vmatpush1.bf16.msra.mxu0 0
    %308 = vmatprep.subr.bf16.mxu0 0
    %309 = vmatpush1.bf16.msra.mxu0 0
    %310 = vmatprep.mubr.bf16.mxu0 0
    %311 = vmatmul.mubr.bf16.gmra.mrb[0].mxu0 %v211
    %v312 = vpop.f32.mrb[0].mxu0
    %v313 = vadd.f32 0.0, %v312
    %v314 = vpop.f32.mrb[0].mxu0
    %v315 = vpop.f32.mrb[0].mxu0
    %v316 = vadd.f32 0.0, %v315
    %v317 = vpop.f32.mrb[0].mxu0
    %318 = vdwg.mxu0
    %v319 = vadd.f32 %v212, %v313
    %v320 = vadd.f32 %v213, %v316
    %321 = vst.msk [vmem:[#allocation2] sm:$0xff] %vm148, %v319
    %322 = vst.msk [vmem:[#allocation2 + $0x8] sm:$0xff] %vm148, %v320
    // Predicated region
    $region62: #{tpu_custom_call.1} parent=1 // pred_check
      %p323 = pneg %p115
    $region63: #{tpu_custom_call.1} parent=1 // pred_check_branch
      %325 = sbr.rel (%p323) target = $region65
    $region64: #{tpu_custom_call.1} parent=1 // pred_region
      %v326 = vld [vmem:[#allocation2] sm:$0xff]
      %v327 = vld [vmem:[#allocation2 + $0x8] sm:$0xff]
      %v328 = vld [vmem:[#allocation11] sm:$0x1]
      %v330 = vlaneseq
      %v331 = vshrl.u32 %v330, 7
      %v332 = vsub.s32 0, %v331
      %v333 = vrot.slane %v328, %v332
      %v335 = vadd.f32 %v326, %v333
      %v336 = vadd.f32 %v327, %v333
      %v337 = vadd.f32 %v335, %v122
      %v338 = vadd.f32 %v336, %v123
      %v339 = vsel %vm148, %v337, 0.0
      %340 = vadd.xlane.f32.xlu0 %v339
      %v341 = vpop.xlane.xlu0 %340
      %v342 = vsel %vm148, %v338, 0.0
      %343 = vadd.xlane.f32.xlu0 %v342
      %v344 = vpop.xlane.xlu0 %343
      %v345 = vmul.f32 %v337, %v337
      %v346 = vmul.f32 %v338, %v338
      %v347 = vsel %vm148, %v345, 0.0
      %348 = vadd.xlane.f32.xlu0 %v347
      %v349 = vpop.xlane.xlu0 %348
      %v350 = vsel %vm148, %v346, 0.0
      %351 = vadd.xlane.f32.xlu0 %v350
      %v352 = vpop.xlane.xlu0 %351
      %v353 = vmul.f32 %v341, 0.03125
      %v354 = vmul.f32 %v344, 0.03125
      %v355 = vmul.f32 %v349, 0.03125
      %v356 = vmul.f32 %v352, 0.03125
      %v357 = vmul.f32 %v353, %v353
      %v358 = vmul.f32 %v354, %v354
      %v359 = vsub.f32 %v355, %v357
      %v360 = vsub.f32 %v356, %v358
      %v361 = vmax.f32 %v359, 0.0
      %v362 = vmax.f32 %v360, 0.0
      %v363 = vsub.f32 %v337, %v353
      %v364 = vsub.f32 %v338, %v354
      %v365 = vadd.f32 %v361, 1e-09
      %v366 = vadd.f32 %v362, 1e-09
      %v367 = vrsqrt.pop %v365
      %v368 = vrsqrt.pop %v366
      %v369 = vmul.f32 %v363, %v367
      %v370 = vmul.f32 %v364, %v368
      %v371 = vld [vmem:[#allocation12] sm:$0x1]
      %v373 = vlaneseq
      %v374 = vshrl.u32 %v373, 7
      %v375 = vsub.s32 0, %v374
      %v376 = vrot.slane %v371, %v375
      %v378 = vmul.f32 %v369, %v376
      %v379 = vmul.f32 %v370, %v376
      %v380 = vld [vmem:[#allocation14] sm:$0x1]
      %v382 = vlaneseq
      %v383 = vshrl.u32 %v382, 7
      %v384 = vsub.s32 0, %v383
      %v385 = vrot.slane %v380, %v384
      %v387 = vadd.f32 %v378, %v385
      %v388 = vadd.f32 %v379, %v385
      %389 = vst.msk [vmem:[#allocation15] sm:$0xff] %vm148, %v387
      %390 = vst.msk [vmem:[#allocation15 + $0x8] sm:$0xff] %vm148, %v388
    $region65: #{tpu_custom_call.1} parent=1 // pred_fallthru
      _
    // Predicated region
    $region66: #{tpu_custom_call.1} parent=1 // pred_check
      _
    $region67: #{tpu_custom_call.1} parent=1 // pred_check_branch
      %392 = sbr.rel (0) target = $region69
    $region68: #{tpu_custom_call.1} parent=1 // pred_region
      %s394 = ssub.s32 256, 256
      %395 = vsyncadd [#allocation5], %s394
      %s396 = sshll.u32 [#allocation15], 4
      %s397 = int_to_ptr.vmem [resolvable:$true] %s396
      %402 = dma.vmem_to_hbm [thread:$0]  %s397, 256, %s7, [#allocation5], 128, 128, 8
    $region69: #{tpu_custom_call.1} parent=1 // pred_fallthru
      _
    // Predicated region
    $region70: #{tpu_custom_call.1} parent=1 // pred_check
      _
    $region71: #{tpu_custom_call.1} parent=1 // pred_check_branch
      %404 = sbr.rel (0) target = $region73
    $region72: #{tpu_custom_call.1} parent=1 // pred_region
      %405 = dma.done [#allocation5], 256
    $region73: #{tpu_custom_call.1} parent=1 // pred_fallthru
      _
    %406 = vsyncpa [#allocation4], 1
    %407 = vsyncpa [#allocation7], 1
    %408 = vsyncpa [#allocation10], 1
    %409 = vsyncpa [#allocation13], 1
    %410 = vsyncpa [#allocation5], 1

</llo_original>
